<compile_context>
chip_gen: v7x
topology: tpu7x:2x2x1
jax: 0.10.0
libtpu: 0.0.40
codegen_flags: <defaults>
</compile_context>

<pallas_src>
import functools

import jax
import jax.numpy as jnp
from jax import lax
from jax.experimental import pallas as pl
from jax.experimental.pallas import tpu as pltpu


def _round_up(x, m):
    return ((x + m - 1) // m) * m


def _pick_q_tile(n_pad, max_tile=256):
    """Largest multiple of 8 that divides n_pad, capped at max_tile."""
    if n_pad <= max_tile:
        return n_pad
    best = 8
    for t in range(8, max_tile + 1, 8):
        if n_pad % t == 0:
            best = t
    return best


def _attention_kernel(x_ref, wqkv_ref, wproj_ref, bproj_ref, o_ref,
                      q_scr, k_scr, v_scr, stage_scr,
                      *, num_heads, head_dim, scale, q_tile, seq_len, n_pad):
    qi = pl.program_id(1)
    d = num_heads * head_dim

    # ---- Once per batch element: one (N_pad, D) @ (D, 3D) QKV matmul, then
    # head-major relayout into (H, N_pad, Dh) bf16 scratch (scale folded
    # into Q).  Amortised over all query tiles of this batch element. ----
    @pl.when(qi == 0)
    def _():
        xf = x_ref[0]                                               # (N_pad, D) bf16
        qkv = jnp.dot(xf, wqkv_ref[...],
                      preferred_element_type=jnp.float32)           # (N_pad, 3D) f32
        for h in range(num_heads):                                  # static small loop
            lo, hi = h * head_dim, (h + 1) * head_dim
            q_scr[h] = (qkv[:, lo:hi] * scale).astype(jnp.bfloat16)
            k_scr[h] = qkv[:, d + lo:d + hi].astype(jnp.bfloat16)
            v_scr[h] = qkv[:, 2 * d + lo:2 * d + hi].astype(jnp.bfloat16)

    row0 = pl.multiple_of(qi * q_tile, q_tile)

    # Key-padding mask bias (static check: only materialised if N was padded).
    if n_pad != seq_len:
        col = lax.broadcasted_iota(jnp.int32, (1, n_pad), 1)
        mask_bias = jnp.where(col < seq_len,
                              jnp.float32(0.0), jnp.float32(-1e30))  # (1, N_pad)
    else:
        mask_bias = None

    # ---- Per-head attention; heads staged into a (q_tile, D) bf16 buffer ----
    for h in range(num_heads):
        lo, hi = h * head_dim, (h + 1) * head_dim
        qh = q_scr[h, pl.ds(row0, q_tile), :]                        # (tq, Dh) bf16
        kh = k_scr[h]                                                # (N_pad, Dh) bf16
        vh = v_scr[h]                                                # (N_pad, Dh) bf16

        # dots = qh @ kh^T (contract Dh), f32 accumulation on the MXU.
        dots = lax.dot_general(qh, kh, (((1,), (1,)), ((), ())),
                               preferred_element_type=jnp.float32)   # (tq, N_pad)
        if mask_bias is not None:
            dots = dots + mask_bias

        # Numerically stable softmax; elementwise math in f32 (v5e-safe).
        m = jnp.max(dots, axis=-1, keepdims=True)
        e = jnp.exp(dots - m)
        s = jnp.sum(e, axis=-1, keepdims=True)
        attn = e * pl.reciprocal(s, approx=True)   # EUP; ~1e-3 rel err, OK here
        # attn_drop: p = 0.0 -> identity.

        out_h = jnp.dot(attn.astype(jnp.bfloat16), vh,
                        preferred_element_type=jnp.float32)          # (tq, Dh)
        stage_scr[:, lo:hi] = out_h.astype(jnp.bfloat16)

    # ---- Single D-deep output projection + bias (full MXU contraction) ----
    y = jnp.dot(stage_scr[...], wproj_ref[...],
                preferred_element_type=jnp.float32) + bproj_ref[...]
    # proj_drop: p = 0.0 -> identity.
    o_ref[0] = y.astype(o_ref.dtype)


def attention_forward(x, w_qkv, w_proj, b_proj, *, num_heads, q_tile=None):
    """Forward pass of the ViT Attention module.

    x: (B, N, D) ; w_qkv: (D, 3D) ; w_proj: (D, D) ; b_proj: (1, D) or (D,).
    Weights may be pre-cast to bf16 by the caller (recommended: cast once).
    """
    b, n, d = x.shape
    assert d % num_heads == 0, "dim must be divisible by num_heads"
    head_dim = d // num_heads
    scale = head_dim ** (-0.5)

    # Pad N so score tiles are lane dense and q_tile is a real tile.
    n_pad = _round_up(n, 128) if n >= 128 else _round_up(n, 8)
    if q_tile is None:
        q_tile = _pick_q_tile(n_pad)
    assert n_pad % q_tile == 0 and q_tile % 8 == 0
    nq = n_pad // q_tile

    # bf16 activations / weights (f32 accumulation inside the kernel).
    x_bf = x.astype(jnp.bfloat16)
    if n_pad != n:
        x_bf = jnp.pad(x_bf, ((0, 0), (0, n_pad - n), (0, 0)))
    w_qkv_bf = w_qkv if w_qkv.dtype == jnp.bfloat16 else w_qkv.astype(jnp.bfloat16)
    w_proj_bf = w_proj if w_proj.dtype == jnp.bfloat16 else w_proj.astype(jnp.bfloat16)
    b_proj_f32 = b_proj.reshape(1, d).astype(jnp.float32)

    # VMEM budget from actual buffer sizes (not the whole per-TC VMEM).
    out_itemsize = jnp.dtype(x.dtype).itemsize
    io_bytes = (n_pad * d * 2            # x block (bf16)
                + d * 3 * d * 2          # w_qkv (bf16)
                + d * d * 2              # w_proj (bf16)
                + d * 4                  # b_proj (f32)
                + q_tile * d * out_itemsize)
    scratch_bytes = 3 * num_heads * n_pad * head_dim * 2 + q_tile * d * 2
    total_bytes = 2 * io_bytes + scratch_bytes      # double-buffered I/O + scratch
    vmem_limit = int(min(max(2 * total_bytes, 16 << 20), 48 << 20))

    kernel = functools.partial(
        _attention_kernel,
        num_heads=num_heads, head_dim=head_dim, scale=scale,
        q_tile=q_tile, seq_len=n, n_pad=n_pad)

    out_padded = pl.pallas_call(
        kernel,
        out_shape=jax.ShapeDtypeStruct((b, n_pad, d), x.dtype),
        grid_spec=pltpu.PrefetchScalarGridSpec(
            num_scalar_prefetch=0,
            grid=(b, nq),
            in_specs=[
                pl.BlockSpec((1, n_pad, d), lambda i, j: (i, 0, 0)),   # x (bf16)
                pl.BlockSpec((d, 3 * d), lambda i, j: (0, 0)),         # w_qkv (bf16)
                pl.BlockSpec((d, d), lambda i, j: (0, 0)),             # w_proj (bf16)
                pl.BlockSpec((1, d), lambda i, j: (0, 0)),             # b_proj (f32)
            ],
            out_specs=pl.BlockSpec((1, q_tile, d), lambda i, j: (i, j, 0)),
            scratch_shapes=[
                pltpu.VMEM((num_heads, n_pad, head_dim), jnp.bfloat16),  # Q (pre-scaled)
                pltpu.VMEM((num_heads, n_pad, head_dim), jnp.bfloat16),  # K
                pltpu.VMEM((num_heads, n_pad, head_dim), jnp.bfloat16),  # V
                pltpu.VMEM((q_tile, d), jnp.bfloat16),                   # head-concat stage
            ],
        ),
        compiler_params=pltpu.CompilerParams(
            # Batch axis parallel (megacore); q-tile axis must stay
            # "arbitrary": it reuses the Q/K/V scratch written at qi == 0.
            dimension_semantics=("parallel", "arbitrary"),
            vmem_limit_bytes=vmem_limit,
        ),
    )(x_bf, w_qkv_bf, w_proj_bf, b_proj_f32)

    return out_padded[:, :n, :] if n_pad != n else out_padded


def attention_reference(x, w_qkv, w_proj, b_proj, *, num_heads):
    """Pure-JAX (f32) reference matching the PyTorch forward."""
    b, n, d = x.shape
    head_dim = d // num_heads
    scale = head_dim ** (-0.5)
    qkv = x @ w_qkv                                              # (B, N, 3D)
    qkv = qkv.reshape(b, n, 3, num_heads, head_dim)
    qkv = jnp.transpose(qkv, (2, 0, 3, 1, 4))                    # (3, B, H, N, Dh)
    q, k, v = qkv[0], qkv[1], qkv[2]
    dots = jnp.einsum('bhid,bhjd->bhij', q, k) * scale
    attn = jax.nn.softmax(dots, axis=-1)
    out = jnp.einsum('bhij,bhjd->bhid', attn, v)
    out = jnp.transpose(out, (0, 2, 1, 3)).reshape(b, n, d)
    return out @ w_proj + b_proj.reshape(1, d)


if __name__ == "__main__":
    # Small shapes consistent with the forward: (n_samples, n_patches + 1, dim).
    # N = 30 exercises the sequence padding (-> 32) + key-masking path, and
    # q_tile = 16 exercises the multi-query-tile grid with the qi==0 QKV cache.
    B, N, DIM, HEADS = 2, 30, 128, 2

    key = jax.random.PRNGKey(0)
    kx, kqkv, kproj, kbias = jax.random.split(key, 4)

    x = jax.random.normal(kx, (B, N, DIM), dtype=jnp.float32)
    # qkv_bias=False per module default; proj has a bias.
    w_qkv = jax.random.normal(kqkv, (DIM, 3 * DIM), dtype=jnp.float32) * 0.02
    w_proj = jax.random.normal(kproj, (DIM, DIM), dtype=jnp.float32) * 0.02
    b_proj = jax.random.normal(kbias, (1, DIM), dtype=jnp.float32) * 0.02

    # Pre-cast the weights to bf16 once, outside the forward (perf review).
    w_qkv_bf = w_qkv.astype(jnp.bfloat16)
    w_proj_bf = w_proj.astype(jnp.bfloat16)

    out = attention_forward(x, w_qkv_bf, w_proj_bf, b_proj,
                            num_heads=HEADS, q_tile=16)
    out = jax.block_until_ready(out)

    ref = attention_reference(x, w_qkv, w_proj, b_proj, num_heads=HEADS)
    assert out.shape == (B, N, DIM)
    max_err = float(jnp.max(jnp.abs(out - ref)))
    assert jnp.allclose(out, ref, atol=1e-2, rtol=1e-2), (
        f"mismatch vs reference (max abs err {max_err})")

    print("KERNEL_OK")
</pallas_src>

<mosaic_0001>
module attributes {stable_mosaic.version = 11 : i64} {
  func.func @_attention_kernel(%arg0: i32, %arg1: i32, %arg2: memref<1x32x128xbf16, #tpu.memory_space<vmem>>, %arg3: memref<128x384xbf16, #tpu.memory_space<vmem>>, %arg4: memref<128x128xbf16, #tpu.memory_space<vmem>>, %arg5: memref<1x128xf32, #tpu.memory_space<vmem>>, %arg6: memref<1x16x128xf32, #tpu.memory_space<vmem>>, %arg7: memref<2x32x64xbf16, #tpu.memory_space<vmem>>, %arg8: memref<2x32x64xbf16, #tpu.memory_space<vmem>>, %arg9: memref<2x32x64xbf16, #tpu.memory_space<vmem>>, %arg10: memref<16x128xbf16, #tpu.memory_space<vmem>>) attributes {dimension_semantics = [#tpu.dimension_semantics<parallel>, #tpu.dimension_semantics<arbitrary>], iteration_bounds = array<i64: 2, 2>, scalar_prefetch = 0 : i64, scratch_operands = 4 : i64, tpu.core_type = #tpu.core_type<tc>, window_params = [{transform_indices = @transform_0, window_bounds = array<i64: 1, 32, 128>}, {pipeline_mode = #tpu.pipeline_mode<synchronous>, transform_indices = @transform_1, window_bounds = array<i64: 128, 384>}, {pipeline_mode = #tpu.pipeline_mode<synchronous>, transform_indices = @transform_2, window_bounds = array<i64: 128, 128>}, {pipeline_mode = #tpu.pipeline_mode<synchronous>, transform_indices = @transform_3, window_bounds = array<i64: 1, 128>}, {transform_indices = @transform_4, window_bounds = array<i64: 1, 16, 128>}]} {
    %c0_i32 = arith.constant 0 : i32
    %0 = arith.cmpi eq, %arg1, %c0_i32 : i32
    %1 = arith.extui %0 : i1 to i32
    %c0_i32_0 = arith.constant 0 : i32
    %2 = arith.cmpi ne, %1, %c0_i32_0 : i32
    scf.if %2 {
      %c0_37 = arith.constant 0 : index
      %c0_38 = arith.constant 0 : index
      %c0_39 = arith.constant 0 : index
      %68 = vector.load %arg2[%c0_37, %c0_38, %c0_39] : memref<1x32x128xbf16, #tpu.memory_space<vmem>>, vector<1x32x128xbf16>
      %69 = vector.shape_cast %68 : vector<1x32x128xbf16> to vector<32x128xbf16>
      %c0_40 = arith.constant 0 : index
      %c0_41 = arith.constant 0 : index
      %70 = vector.load %arg3[%c0_40, %c0_41] : memref<128x384xbf16, #tpu.memory_space<vmem>>, vector<128x384xbf16>
      %cst_42 = arith.constant dense<0.000000e+00> : vector<32x384xf32>
      %71 = tpu.matmul %69, %70, %cst_42 {dimension_numbers = #tpu.dot_dimension_numbers<[1], [0], [0], [1], [0, 0, 1, 1], [], []>} : vector<32x128xbf16>, vector<128x384xbf16>, vector<32x384xf32> -> vector<32x384xf32>
      %72 = vector.extract_strided_slice %71 {offsets = [0, 0], sizes = [32, 64], strides = [1, 1]} : vector<32x384xf32> to vector<32x64xf32>
      %cst_43 = arith.constant 1.250000e-01 : f32
      %73 = vector.broadcast %cst_43 : f32 to vector<32x64xf32>
      %74 = arith.mulf %72, %73 : vector<32x64xf32>
      %75 = arith.truncf %74 : vector<32x64xf32> to vector<32x64xbf16>
      %c0_44 = arith.constant 0 : index
      %c0_45 = arith.constant 0 : index
      %c0_46 = arith.constant 0 : index
      %76 = vector.load %arg7[%c0_44, %c0_45, %c0_46] : memref<2x32x64xbf16, #tpu.memory_space<vmem>>, vector<1x32x64xbf16>
      %77 = vector.shape_cast %76 : vector<1x32x64xbf16> to vector<32x64xbf16>
      %78 = vector.shape_cast %75 : vector<32x64xbf16> to vector<1x32x64xbf16>
      tpu.vector_store %arg7[%c0_44, %c0_45, %c0_46], %78 {strides = array<i32>} : memref<2x32x64xbf16, #tpu.memory_space<vmem>>, vector<1x32x64xbf16>,
      %79 = vector.extract_strided_slice %71 {offsets = [0, 128], sizes = [32, 64], strides = [1, 1]} : vector<32x384xf32> to vector<32x64xf32>
      %80 = arith.truncf %79 : vector<32x64xf32> to vector<32x64xbf16>
      %c0_47 = arith.constant 0 : index
      %c0_48 = arith.constant 0 : index
      %c0_49 = arith.constant 0 : index
      %81 = vector.load %arg8[%c0_47, %c0_48, %c0_49] : memref<2x32x64xbf16, #tpu.memory_space<vmem>>, vector<1x32x64xbf16>
      %82 = vector.shape_cast %81 : vector<1x32x64xbf16> to vector<32x64xbf16>
      %83 = vector.shape_cast %80 : vector<32x64xbf16> to vector<1x32x64xbf16>
      tpu.vector_store %arg8[%c0_47, %c0_48, %c0_49], %83 {strides = array<i32>} : memref<2x32x64xbf16, #tpu.memory_space<vmem>>, vector<1x32x64xbf16>,
      %84 = vector.extract_strided_slice %71 {offsets = [0, 256], sizes = [32, 64], strides = [1, 1]} : vector<32x384xf32> to vector<32x64xf32>
      %85 = arith.truncf %84 : vector<32x64xf32> to vector<32x64xbf16>
      %c0_50 = arith.constant 0 : index
      %c0_51 = arith.constant 0 : index
      %c0_52 = arith.constant 0 : index
      %86 = vector.load %arg9[%c0_50, %c0_51, %c0_52] : memref<2x32x64xbf16, #tpu.memory_space<vmem>>, vector<1x32x64xbf16>
      %87 = vector.shape_cast %86 : vector<1x32x64xbf16> to vector<32x64xbf16>
      %88 = vector.shape_cast %85 : vector<32x64xbf16> to vector<1x32x64xbf16>
      tpu.vector_store %arg9[%c0_50, %c0_51, %c0_52], %88 {strides = array<i32>} : memref<2x32x64xbf16, #tpu.memory_space<vmem>>, vector<1x32x64xbf16>,
      %89 = vector.extract_strided_slice %71 {offsets = [0, 64], sizes = [32, 64], strides = [1, 1]} : vector<32x384xf32> to vector<32x64xf32>
      %cst_53 = arith.constant 1.250000e-01 : f32
      %90 = vector.broadcast %cst_53 : f32 to vector<32x64xf32>
      %91 = arith.mulf %89, %90 : vector<32x64xf32>
      %92 = arith.truncf %91 : vector<32x64xf32> to vector<32x64xbf16>
      %c1_54 = arith.constant 1 : index
      %c0_55 = arith.constant 0 : index
      %c0_56 = arith.constant 0 : index
      %93 = vector.load %arg7[%c1_54, %c0_55, %c0_56] : memref<2x32x64xbf16, #tpu.memory_space<vmem>>, vector<1x32x64xbf16>
      %94 = vector.shape_cast %93 : vector<1x32x64xbf16> to vector<32x64xbf16>
      %95 = vector.shape_cast %92 : vector<32x64xbf16> to vector<1x32x64xbf16>
      tpu.vector_store %arg7[%c1_54, %c0_55, %c0_56], %95 {strides = array<i32>} : memref<2x32x64xbf16, #tpu.memory_space<vmem>>, vector<1x32x64xbf16>,
      %96 = vector.extract_strided_slice %71 {offsets = [0, 192], sizes = [32, 64], strides = [1, 1]} : vector<32x384xf32> to vector<32x64xf32>
      %97 = arith.truncf %96 : vector<32x64xf32> to vector<32x64xbf16>
      %c1_57 = arith.constant 1 : index
      %c0_58 = arith.constant 0 : index
      %c0_59 = arith.constant 0 : index
      %98 = vector.load %arg8[%c1_57, %c0_58, %c0_59] : memref<2x32x64xbf16, #tpu.memory_space<vmem>>, vector<1x32x64xbf16>
      %99 = vector.shape_cast %98 : vector<1x32x64xbf16> to vector<32x64xbf16>
      %100 = vector.shape_cast %97 : vector<32x64xbf16> to vector<1x32x64xbf16>
      tpu.vector_store %arg8[%c1_57, %c0_58, %c0_59], %100 {strides = array<i32>} : memref<2x32x64xbf16, #tpu.memory_space<vmem>>, vector<1x32x64xbf16>,
      %101 = vector.extract_strided_slice %71 {offsets = [0, 320], sizes = [32, 64], strides = [1, 1]} : vector<32x384xf32> to vector<32x64xf32>
      %102 = arith.truncf %101 : vector<32x64xf32> to vector<32x64xbf16>
      %c1_60 = arith.constant 1 : index
      %c0_61 = arith.constant 0 : index
      %c0_62 = arith.constant 0 : index
      %103 = vector.load %arg9[%c1_60, %c0_61, %c0_62] : memref<2x32x64xbf16, #tpu.memory_space<vmem>>, vector<1x32x64xbf16>
      %104 = vector.shape_cast %103 : vector<1x32x64xbf16> to vector<32x64xbf16>
      %105 = vector.shape_cast %102 : vector<32x64xbf16> to vector<1x32x64xbf16>
      tpu.vector_store %arg9[%c1_60, %c0_61, %c0_62], %105 {strides = array<i32>} : memref<2x32x64xbf16, #tpu.memory_space<vmem>>, vector<1x32x64xbf16>,
    } else {
    }
    %c16_i32 = arith.constant 16 : i32
    %3 = arith.muli %arg1, %c16_i32 : i32
    %4 = tpu.assume_multiple %3, 16 : i32
    %5 = tpu.iota {dimensions = array<i32: 1>} : vector<1x32xi32>
    %c30_i32 = arith.constant 30 : i32
    %6 = vector.broadcast %c30_i32 : i32 to vector<1x32xi32>
    %7 = arith.cmpi slt, %5, %6 : vector<1x32xi32>
    %cst = arith.constant 0.000000e+00 : f32
    %cst_1 = arith.constant -1.000000e+30 : f32
    %8 = vector.broadcast %cst : f32 to vector<1x32xf32>
    %9 = vector.broadcast %cst_1 : f32 to vector<1x32xf32>
    %10 = arith.select %7, %8, %9 : vector<1x32xi1>, vector<1x32xf32>
    %c0 = arith.constant 0 : index
    %11 = arith.index_cast %4 : i32 to index
    %c0_2 = arith.constant 0 : index
    %12 = vector.load %arg7[%c0, %11, %c0_2] : memref<2x32x64xbf16, #tpu.memory_space<vmem>>, vector<1x16x64xbf16>
    %13 = vector.shape_cast %12 : vector<1x16x64xbf16> to vector<16x64xbf16>
    %c0_3 = arith.constant 0 : index
    %c0_4 = arith.constant 0 : index
    %c0_5 = arith.constant 0 : index
    %14 = vector.load %arg8[%c0_3, %c0_4, %c0_5] : memref<2x32x64xbf16, #tpu.memory_space<vmem>>, vector<1x32x64xbf16>
    %15 = vector.shape_cast %14 : vector<1x32x64xbf16> to vector<32x64xbf16>
    %c0_6 = arith.constant 0 : index
    %c0_7 = arith.constant 0 : index
    %c0_8 = arith.constant 0 : index
    %16 = vector.load %arg9[%c0_6, %c0_7, %c0_8] : memref<2x32x64xbf16, #tpu.memory_space<vmem>>, vector<1x32x64xbf16>
    %17 = vector.shape_cast %16 : vector<1x32x64xbf16> to vector<32x64xbf16>
    %cst_9 = arith.constant dense<0.000000e+00> : vector<16x32xf32>
    %18 = tpu.matmul %13, %15, %cst_9 {dimension_numbers = #tpu.dot_dimension_numbers<[1], [1], [0], [0], [0, 0, 1, 0], [], []>} : vector<16x64xbf16>, vector<32x64xbf16>, vector<16x32xf32> -> vector<16x32xf32>
    %19 = vector.broadcast %10 : vector<1x32xf32> to vector<16x32xf32>
    %20 = arith.addf %18, %19 : vector<16x32xf32>
    %cst_10 = arith.constant dense<0xFF800000> : vector<16xf32>
    %21 = vector.multi_reduction <maximumf>, %20, %cst_10 [1] : vector<16x32xf32> to vector<16xf32>
    %22 = vector.shape_cast %21 : vector<16xf32> to vector<16x1xf32>
    %23 = vector.broadcast %22 : vector<16x1xf32> to vector<16x32xf32>
    %24 = arith.subf %20, %23 : vector<16x32xf32>
    %25 = math.exp %24 : vector<16x32xf32>
    %cst_11 = arith.constant dense<0.000000e+00> : vector<16xf32>
    %26 = vector.multi_reduction <add>, %25, %cst_11 [1] : vector<16x32xf32> to vector<16xf32>
    %27 = vector.shape_cast %26 : vector<16xf32> to vector<16x1xf32>
    %28 = tpu.reciprocal %27 {approx = true} : vector<16x1xf32> -> vector<16x1xf32>
    %29 = vector.broadcast %28 : vector<16x1xf32> to vector<16x32xf32>
    %30 = arith.mulf %25, %29 : vector<16x32xf32>
    %31 = arith.truncf %30 : vector<16x32xf32> to vector<16x32xbf16>
    %cst_12 = arith.constant dense<0.000000e+00> : vector<16x64xf32>
    %32 = tpu.matmul %31, %17, %cst_12 {dimension_numbers = #tpu.dot_dimension_numbers<[1], [0], [0], [1], [0, 0, 1, 1], [], []>} : vector<16x32xbf16>, vector<32x64xbf16>, vector<16x64xf32> -> vector<16x64xf32>
    %33 = arith.truncf %32 : vector<16x64xf32> to vector<16x64xbf16>
    %c0_13 = arith.constant 0 : index
    %c0_14 = arith.constant 0 : index
    %34 = vector.load %arg10[%c0_13, %c0_14] : memref<16x128xbf16, #tpu.memory_space<vmem>>, vector<16x64xbf16>
    tpu.vector_store %arg10[%c0_13, %c0_14], %33 {strides = array<i32>} : memref<16x128xbf16, #tpu.memory_space<vmem>>, vector<16x64xbf16>,
    %c1 = arith.constant 1 : index
    %35 = arith.index_cast %4 : i32 to index
    %c0_15 = arith.constant 0 : index
    %36 = vector.load %arg7[%c1, %35, %c0_15] : memref<2x32x64xbf16, #tpu.memory_space<vmem>>, vector<1x16x64xbf16>
    %37 = vector.shape_cast %36 : vector<1x16x64xbf16> to vector<16x64xbf16>
    %c1_16 = arith.constant 1 : index
    %c0_17 = arith.constant 0 : index
    %c0_18 = arith.constant 0 : index
    %38 = vector.load %arg8[%c1_16, %c0_17, %c0_18] : memref<2x32x64xbf16, #tpu.memory_space<vmem>>, vector<1x32x64xbf16>
    %39 = vector.shape_cast %38 : vector<1x32x64xbf16> to vector<32x64xbf16>
    %c1_19 = arith.constant 1 : index
    %c0_20 = arith.constant 0 : index
    %c0_21 = arith.constant 0 : index
    %40 = vector.load %arg9[%c1_19, %c0_20, %c0_21] : memref<2x32x64xbf16, #tpu.memory_space<vmem>>, vector<1x32x64xbf16>
    %41 = vector.shape_cast %40 : vector<1x32x64xbf16> to vector<32x64xbf16>
    %cst_22 = arith.constant dense<0.000000e+00> : vector<16x32xf32>
    %42 = tpu.matmul %37, %39, %cst_22 {dimension_numbers = #tpu.dot_dimension_numbers<[1], [1], [0], [0], [0, 0, 1, 0], [], []>} : vector<16x64xbf16>, vector<32x64xbf16>, vector<16x32xf32> -> vector<16x32xf32>
    %43 = vector.broadcast %10 : vector<1x32xf32> to vector<16x32xf32>
    %44 = arith.addf %42, %43 : vector<16x32xf32>
    %cst_23 = arith.constant dense<0xFF800000> : vector<16xf32>
    %45 = vector.multi_reduction <maximumf>, %44, %cst_23 [1] : vector<16x32xf32> to vector<16xf32>
    %46 = vector.shape_cast %45 : vector<16xf32> to vector<16x1xf32>
    %47 = vector.broadcast %46 : vector<16x1xf32> to vector<16x32xf32>
    %48 = arith.subf %44, %47 : vector<16x32xf32>
    %49 = math.exp %48 : vector<16x32xf32>
    %cst_24 = arith.constant dense<0.000000e+00> : vector<16xf32>
    %50 = vector.multi_reduction <add>, %49, %cst_24 [1] : vector<16x32xf32> to vector<16xf32>
    %51 = vector.shape_cast %50 : vector<16xf32> to vector<16x1xf32>
    %52 = tpu.reciprocal %51 {approx = true} : vector<16x1xf32> -> vector<16x1xf32>
    %53 = vector.broadcast %52 : vector<16x1xf32> to vector<16x32xf32>
    %54 = arith.mulf %49, %53 : vector<16x32xf32>
    %55 = arith.truncf %54 : vector<16x32xf32> to vector<16x32xbf16>
    %cst_25 = arith.constant dense<0.000000e+00> : vector<16x64xf32>
    %56 = tpu.matmul %55, %41, %cst_25 {dimension_numbers = #tpu.dot_dimension_numbers<[1], [0], [0], [1], [0, 0, 1, 1], [], []>} : vector<16x32xbf16>, vector<32x64xbf16>, vector<16x64xf32> -> vector<16x64xf32>
    %57 = arith.truncf %56 : vector<16x64xf32> to vector<16x64xbf16>
    %c0_26 = arith.constant 0 : index
    %c64 = arith.constant 64 : index
    %58 = vector.load %arg10[%c0_26, %c64] : memref<16x128xbf16, #tpu.memory_space<vmem>>, vector<16x64xbf16>
    tpu.vector_store %arg10[%c0_26, %c64], %57 {strides = array<i32>} : memref<16x128xbf16, #tpu.memory_space<vmem>>, vector<16x64xbf16>,
    %c0_27 = arith.constant 0 : index
    %c0_28 = arith.constant 0 : index
    %59 = vector.load %arg10[%c0_27, %c0_28] : memref<16x128xbf16, #tpu.memory_space<vmem>>, vector<16x128xbf16>
    %c0_29 = arith.constant 0 : index
    %c0_30 = arith.constant 0 : index
    %60 = vector.load %arg4[%c0_29, %c0_30] : memref<128x128xbf16, #tpu.memory_space<vmem>>, vector<128x128xbf16>
    %cst_31 = arith.constant dense<0.000000e+00> : vector<16x128xf32>
    %61 = tpu.matmul %59, %60, %cst_31 {dimension_numbers = #tpu.dot_dimension_numbers<[1], [0], [0], [1], [0, 0, 1, 1], [], []>} : vector<16x128xbf16>, vector<128x128xbf16>, vector<16x128xf32> -> vector<16x128xf32>
    %c0_32 = arith.constant 0 : index
    %c0_33 = arith.constant 0 : index
    %62 = vector.load %arg5[%c0_32, %c0_33] : memref<1x128xf32, #tpu.memory_space<vmem>>, vector<1x128xf32>
    %63 = vector.broadcast %62 : vector<1x128xf32> to vector<16x128xf32>
    %64 = arith.addf %61, %63 : vector<16x128xf32>
    %c0_34 = arith.constant 0 : index
    %c0_35 = arith.constant 0 : index
    %c0_36 = arith.constant 0 : index
    %65 = vector.load %arg6[%c0_34, %c0_35, %c0_36] : memref<1x16x128xf32, #tpu.memory_space<vmem>>, vector<1x16x128xf32>
    %66 = vector.shape_cast %65 : vector<1x16x128xf32> to vector<16x128xf32>
    %67 = vector.shape_cast %64 : vector<16x128xf32> to vector<1x16x128xf32>
    tpu.vector_store %arg6[%c0_34, %c0_35, %c0_36], %67 {strides = array<i32>} : memref<1x16x128xf32, #tpu.memory_space<vmem>>, vector<1x16x128xf32>,
    return
  }
  func.func @transform_0(%arg0: i32, %arg1: i32) -> (i32, i32, i32) {
    %c0_i32 = arith.constant 0 : i32
    %c0_i32_0 = arith.constant 0 : i32
    %c0_i32_1 = arith.constant 0 : i32
    return %arg0, %c0_i32, %c0_i32_0 : i32, i32, i32
  }
  func.func @transform_1(%arg0: i32, %arg1: i32) -> (i32, i32) {
    %c0_i32 = arith.constant 0 : i32
    %c0_i32_0 = arith.constant 0 : i32
    %c0_i32_1 = arith.constant 0 : i32
    return %c0_i32, %c0_i32_0 : i32, i32
  }
  func.func @transform_2(%arg0: i32, %arg1: i32) -> (i32, i32) {
    %c0_i32 = arith.constant 0 : i32
    %c0_i32_0 = arith.constant 0 : i32
    %c0_i32_1 = arith.constant 0 : i32
    return %c0_i32, %c0_i32_0 : i32, i32
  }
  func.func @transform_3(%arg0: i32, %arg1: i32) -> (i32, i32) {
    %c0_i32 = arith.constant 0 : i32
    %c0_i32_0 = arith.constant 0 : i32
    %c0_i32_1 = arith.constant 0 : i32
    return %c0_i32, %c0_i32_0 : i32, i32
  }
  func.func @transform_4(%arg0: i32, %arg1: i32) -> (i32, i32, i32) {
    %c0_i32 = arith.constant 0 : i32
    %c0_i32_0 = arith.constant 0 : i32
    return %arg0, %arg1, %c0_i32 : i32, i32, i32
  }
}

</mosaic_0001>

<llo_original>
// kernel: tpu_custom_call.1
$region0: #{tpu_custom_call.1}
  #allocation0 [shape = 'u32[]', space=smem, size = 0x4, offset = 0x4, fixed_abs, tag = 'smem constant byte address 0x4 - core index']
  #allocation1 [shape = 'u32[144,128]{1,0:T(1,128)}', space=vmem, size = 0x12000, scoped, tag = 'internal scratch']
  #allocation2 [shape = 'bf16[2,32,64]{2,1,0:T(16,128)(2,1)}', space=vmem, size = 0x4000, scoped, tag = 'scratch operand']
  #allocation3 [shape = 'bf16[2,32,64]{2,1,0:T(16,128)(2,1)}', space=vmem, size = 0x4000, scoped, tag = 'scratch operand']
  #allocation4 [shape = 'bf16[2,32,64]{2,1,0:T(16,128)(2,1)}', space=vmem, size = 0x4000, scoped, tag = 'scratch operand']
  #allocation5 [shape = 'bf16[16,128]{1,0:T(16,128)(2,1)}', space=vmem, size = 0x1000, scoped, tag = 'scratch operand']
  %s0 = inlined_call_operand.hbm [shape: bf16[2,32,128], index: 0, kind: input, shape index: {}]
  %s1 = inlined_call_operand.hbm [shape: bf16[128,384], index: 1, kind: input, shape index: {}]
  %s2 = inlined_call_operand.hbm [shape: bf16[128,128], index: 2, kind: input, shape index: {}]
  %s3 = inlined_call_operand.vmem [shape: f32[1,128], index: 3, kind: input, shape index: {}]
  %s4 = inlined_call_operand.hbm [shape: f32[2,32,128], index: 4, kind: output, shape index: {}]
  %s5 = sld [smem:[#allocation0]]
  $region65: #{tpu_custom_call.1} parent=0
    _
  %s7 = ssub.s32 1, %s5
  %s8 = scalar_select 0, %s7, %s5
  $region1: #{tpu_custom_call.1} parent=0
    #allocation6 [shape = 'u8[16384]{0}', space=vmem, size = 0x4000, scoped, tag = 'input window, operand 0']
    #allocation7 [shape = 's32[2]{0}', space=sflag, size = 0x8, scoped, tag = 'scoped memory for tpu_custom_call.1']
    #allocation8 [shape = 's32[2]{0}', space=sflag, size = 0x8, scoped, tag = 'scoped memory for tpu_custom_call.1']
    #allocation9 [shape = 'u8[98304]{0}', space=vmem, size = 0x18000, scoped, tag = 'input window, operand 1, single buffered']
    #allocation10 [shape = 's32[1]{0}', space=sflag, size = 0x4, scoped, tag = 'scoped memory for tpu_custom_call.1']
    #allocation11 [shape = 'u8[32768]{0}', space=vmem, size = 0x8000, scoped, tag = 'input window, operand 2, single buffered']
    #allocation12 [shape = 'u8[16384]{0}', space=vmem, size = 0x4000, scoped, tag = 'output window, operand 0']
    %9 = vsyncpa [#allocation7], 0
    %s10 = scalar_lea.sflag [#allocation7], 1
    %11 = vsyncpa %s10, 0
    %12 = vsyncpa [#allocation10], 0
    %13 = vsyncpa [#allocation8], 0
    %s14 = scalar_lea.sflag [#allocation8], 1
    %15 = vsyncpa %s14, 0
    loop: start=0, step=1, limit=6
    $region2: #{tpu_custom_call.1} parent=1 // loop_pre_header
      _
    $region3: #{tpu_custom_call.1} parent=1 // loop_header
      %s17 = sphi 0, %s21
      %p18 = scmp.ge.s32.totalorder %s17, 6
      %s24 = sphi 0, %s36
      %s25 = sphi 0, %s32
      %s26 = sphi 0, %s24
      %s27 = sphi 0, %s25
      %s28 = sphi 0, %s26
      %s29 = sphi 0, %s27
      %s39 = sphi 0, %s41
      %s42 = sphi 0, %s39
      %s43 = sphi 0, %s42
      %s59 = sphi 0, %s43
      %s63 = sphi 0, %s63
      %s65 = sphi 0, %s63
      %s66 = sphi 0, %s65
      %s80 = sphi 0, %s66
      %s84 = sphi 0, %s84
      %s86 = sphi 0, %s84
      %s87 = sphi 0, %s86
      %s101 = sphi 0, %s87
      %s105 = sphi 0, %s105
      %s107 = sphi 0, %s105
      %s108 = sphi 0, %s107
      %s122 = sphi 0, %s108
      %s130 = sphi 0, %s132
      %s133 = sphi 0, %s130
      %s134 = sphi 0, %s133
      %s150 = sphi 0, %s134
    $region4: #{tpu_custom_call.1} parent=1 // loop_header_branch
      %20 = sbr.rel (%p18) target = $region8
    $region5: #{tpu_custom_call.1} parent=1 // loop_body
      %s22 = ssub.s32 %s17, 1
      %s23 = ssub.s32 %s17, 2
      %s30 = sadd.s32 1, %s25
      %p31 = scmp.ge.s32.totalorder %s30, 2
      %s32 = scalar_select %p31, 0, %s30
      %s33 = sadd.s32 1, %s24
      %s34 = scalar_select %p31, %s33, %s24
      %p35 = scmp.ge.s32.totalorder %s34, 2
      %s36 = scalar_select %p35, 0, %s34
      %s37 = ssub.s32 %s24, %s36
      %p38 = scmp.eq.s32.totalorder %s37, 0
      %s40 = sadd.s32 %s39, 1
      %s41 = scalar_select %p38, %s39, %s40
      %p44 = pneg %p38
      %p45 = scmp.eq.s32.totalorder %s17, 3
      %p46 = por %p44, %p45
      %p47 = scmp.ne.s32.totalorder %s39, %s42
      %p48 = scmp.eq.s32.totalorder %s17, 0
      %p49 = por %p47, %p48
      %p50 = scmp.ne.s32.totalorder %s39, %s42
      %p51 = scmp.eq.s32.totalorder %s22, 3
      %p52 = por %p50, %p51
      %p53 = scmp.ne.s32.totalorder %s42, %s43
      %p54 = scmp.eq.s32.totalorder %s22, 0
      %p55 = por %p53, %p54
      %p56 = scmp.ne.s32.totalorder %s42, %s43
      %p57 = scmp.eq.s32.totalorder %s23, 3
      %p58 = por %p56, %p57
      %p60 = scmp.ne.s32.totalorder %s43, %s59
      %p61 = scmp.eq.s32.totalorder %s23, 0
      %p62 = por %p60, %p61
      %s64 = sadd.s32 %s63, 1
      %p67 = scmp.eq.s32.totalorder %s17, 3
      %p68 = scmp.ne.s32.totalorder %s63, %s65
      %p69 = scmp.eq.s32.totalorder %s17, 0
      %p70 = por %p68, %p69
      %p71 = scmp.ne.s32.totalorder %s63, %s65
      %p72 = scmp.eq.s32.totalorder %s22, 3
      %p73 = por %p71, %p72
      %p74 = scmp.ne.s32.totalorder %s65, %s66
      %p75 = scmp.eq.s32.totalorder %s22, 0
      %p76 = por %p74, %p75
      %p77 = scmp.ne.s32.totalorder %s65, %s66
      %p78 = scmp.eq.s32.totalorder %s23, 3
      %p79 = por %p77, %p78
      %p81 = scmp.ne.s32.totalorder %s66, %s80
      %p82 = scmp.eq.s32.totalorder %s23, 0
      %p83 = por %p81, %p82
      %s85 = sadd.s32 %s84, 1
      %p88 = scmp.eq.s32.totalorder %s17, 3
      %p89 = scmp.ne.s32.totalorder %s84, %s86
      %p90 = scmp.eq.s32.totalorder %s17, 0
      %p91 = por %p89, %p90
      %p92 = scmp.ne.s32.totalorder %s84, %s86
      %p93 = scmp.eq.s32.totalorder %s22, 3
      %p94 = por %p92, %p93
      %p95 = scmp.ne.s32.totalorder %s86, %s87
      %p96 = scmp.eq.s32.totalorder %s22, 0
      %p97 = por %p95, %p96
      %p98 = scmp.ne.s32.totalorder %s86, %s87
      %p99 = scmp.eq.s32.totalorder %s23, 3
      %p100 = por %p98, %p99
      %p102 = scmp.ne.s32.totalorder %s87, %s101
      %p103 = scmp.eq.s32.totalorder %s23, 0
      %p104 = por %p102, %p103
      %s106 = sadd.s32 %s105, 1
      %p109 = scmp.eq.s32.totalorder %s17, 3
      %p110 = scmp.ne.s32.totalorder %s105, %s107
      %p111 = scmp.eq.s32.totalorder %s17, 0
      %p112 = por %p110, %p111
      %p113 = scmp.ne.s32.totalorder %s105, %s107
      %p114 = scmp.eq.s32.totalorder %s22, 3
      %p115 = por %p113, %p114
      %p116 = scmp.ne.s32.totalorder %s107, %s108
      %p117 = scmp.eq.s32.totalorder %s22, 0
      %p118 = por %p116, %p117
      %p119 = scmp.ne.s32.totalorder %s107, %s108
      %p120 = scmp.eq.s32.totalorder %s23, 3
      %p121 = por %p119, %p120
      %p123 = scmp.ne.s32.totalorder %s108, %s122
      %p124 = scmp.eq.s32.totalorder %s23, 0
      %p125 = por %p123, %p124
      %s126 = ssub.s32 %s24, %s36
      %s127 = ssub.s32 %s25, %s32
      %s128 = sor.u32 %s126, %s127
      %p129 = scmp.eq.s32.totalorder %s128, 0
      %s131 = sadd.s32 %s130, 1
      %s132 = scalar_select %p129, %s130, %s131
      %p135 = pneg %p129
      %p136 = scmp.eq.s32.totalorder %s17, 3
      %p137 = por %p135, %p136
      %p138 = scmp.ne.s32.totalorder %s130, %s133
      %p139 = scmp.eq.s32.totalorder %s17, 0
      %p140 = por %p138, %p139
      %p141 = scmp.ne.s32.totalorder %s130, %s133
      %p142 = scmp.eq.s32.totalorder %s22, 3
      %p143 = por %p141, %p142
      %p144 = scmp.ne.s32.totalorder %s133, %s134
      %p145 = scmp.eq.s32.totalorder %s22, 0
      %p146 = por %p144, %p145
      %p147 = scmp.ne.s32.totalorder %s133, %s134
      %p148 = scmp.eq.s32.totalorder %s23, 3
      %p149 = por %p147, %p148
      %p151 = scmp.ne.s32.totalorder %s134, %s150
      %p152 = scmp.eq.s32.totalorder %s23, 0
      %p153 = por %p151, %p152
      %p154 = scmp.le.s32.totalorder 1, %s17
      %p155 = scmp.lt.s32.totalorder %s17, 5
      %p156 = pnand %p154, %p155
      %p157 = pneg %p156
      // Predicated region
      $region9: #{tpu_custom_call.1} parent=5 // pred_check
        _
      $region10: #{tpu_custom_call.1} parent=5 // pred_check_branch
        %159 = sbr.rel (%p156) target = $region12
      $region11: #{tpu_custom_call.1} parent=5 // pred_region
        %s160 = ssub.s32 %s17, 1
        // Predicated region
        $region13: #{tpu_custom_call.1} parent=11 // pred_check
          %p161 = pneg %p76
        $region14: #{tpu_custom_call.1} parent=11 // pred_check_branch
          %163 = sbr.rel (%p161) target = $region16
        $region15: #{tpu_custom_call.1} parent=11 // pred_region
          %s165 = ssub.s32 3072, 3072
          %166 = vsyncadd [#allocation10], %s165
          %s167 = sshll.u32 [#allocation9], 4
          %s168 = int_to_ptr.vmem [resolvable:$true] %s167
          %173 = dma.hbm_to_vmem [thread:$0]  %s1, 3072, %s168, [#allocation10], 192, 192, 12
        $region16: #{tpu_custom_call.1} parent=11 // pred_fallthru
          _
        // Predicated region
        $region17: #{tpu_custom_call.1} parent=11 // pred_check
          %p174 = pneg %p97
        $region18: #{tpu_custom_call.1} parent=11 // pred_check_branch
          %176 = sbr.rel (%p174) target = $region20
        $region19: #{tpu_custom_call.1} parent=11 // pred_region
          %s178 = ssub.s32 1024, 1024
          %179 = vsyncadd [#allocation10], %s178
          %s180 = sshll.u32 [#allocation11], 4
          %s181 = int_to_ptr.vmem [resolvable:$true] %s180
          %186 = dma.hbm_to_vmem [thread:$0]  %s2, 1024, %s181, [#allocation10], 64, 64, 4
        $region20: #{tpu_custom_call.1} parent=11 // pred_fallthru
          _
        // Predicated region
        $region21: #{tpu_custom_call.1} parent=11 // pred_check
          %p187 = pneg %p118
        $region22: #{tpu_custom_call.1} parent=11 // pred_check_branch
          %189 = sbr.rel (%p187) target = $region24
        $region23: #{tpu_custom_call.1} parent=11 // pred_region
          _
        $region24: #{tpu_custom_call.1} parent=11 // pred_fallthru
          _
      $region12: #{tpu_custom_call.1} parent=5 // pred_fallthru
        _
      %p190 = scmp.lt.s32.totalorder %s17, 4
      // Predicated region
      $region25: #{tpu_custom_call.1} parent=5 // pred_check
        %p191 = pneg %p190
      $region26: #{tpu_custom_call.1} parent=5 // pred_check_branch
        %193 = sbr.rel (%p191) target = $region28
      $region27: #{tpu_custom_call.1} parent=5 // pred_region
        // Predicated region
        $region29: #{tpu_custom_call.1} parent=27 // pred_check
          %p194 = pneg %p49
        $region30: #{tpu_custom_call.1} parent=27 // pred_check_branch
          %196 = sbr.rel (%p194) target = $region32
        $region31: #{tpu_custom_call.1} parent=27 // pred_region
          %s197 = sand.u32 %s39, 1
          %s198 = scalar_lea.sflag [#allocation7], %s197
          %s199 = sand.u32 %s39, 1
          %s200 = smul.addr %s199, 16
          %s201 = scalar_lea.vmem [#allocation6], %s200
          %s203 = ssub.s32 256, 256
          %204 = vsyncadd %s198, %s203
          %s205 = smul.addr %s24, 4
          %s206 = smul.addr %s205, 64
          %s207 = scalar_lea.hbm %s0, %s206
          %s208 = sshll.u32 %s201, 4
          %s209 = int_to_ptr.vmem [resolvable:$true] %s208
          %214 = dma.hbm_to_vmem [thread:$0]  %s207, 256, %s209, %s198, 64, 64, 4
        $region32: #{tpu_custom_call.1} parent=27 // pred_fallthru
          _
      $region28: #{tpu_custom_call.1} parent=5 // pred_fallthru
        _
      %p215 = scmp.le.s32.totalorder 1, %s17
      %p216 = scmp.lt.s32.totalorder %s17, 5
      %p217 = pnand %p215, %p216
      %p218 = pneg %p217
      // Predicated region
      $region33: #{tpu_custom_call.1} parent=5 // pred_check
        _
      $region34: #{tpu_custom_call.1} parent=5 // pred_check_branch
        %220 = sbr.rel (%p217) target = $region36
      $region35: #{tpu_custom_call.1} parent=5 // pred_region
        %s221 = ssub.s32 %s17, 1
        %s222 = sand.u32 %s42, 1
        %s223 = scalar_lea.sflag [#allocation7], %s222
        %s224 = sand.u32 %s42, 1
        %s225 = smul.addr %s224, 16
        %s226 = scalar_lea.vmem [#allocation6], %s225
        // Predicated region
        $region37: #{tpu_custom_call.1} parent=35 // pred_check
          %p227 = pneg %p55
        $region38: #{tpu_custom_call.1} parent=35 // pred_check_branch
          %229 = sbr.rel (%p227) target = $region40
        $region39: #{tpu_custom_call.1} parent=35 // pred_region
          %230 = dma.done %s223, 256
        $region40: #{tpu_custom_call.1} parent=35 // pred_fallthru
          _
        // Predicated region
        $region41: #{tpu_custom_call.1} parent=35 // pred_check
          %p231 = pneg %p76
        $region42: #{tpu_custom_call.1} parent=35 // pred_check_branch
          %233 = sbr.rel (%p231) target = $region44
        $region43: #{tpu_custom_call.1} parent=35 // pred_region
          %234 = dma.done [#allocation10], 3072
        $region44: #{tpu_custom_call.1} parent=35 // pred_fallthru
          _
        // Predicated region
        $region45: #{tpu_custom_call.1} parent=35 // pred_check
          %p235 = pneg %p97
        $region46: #{tpu_custom_call.1} parent=35 // pred_check_branch
          %237 = sbr.rel (%p235) target = $region48
        $region47: #{tpu_custom_call.1} parent=35 // pred_region
          %238 = dma.done [#allocation10], 1024
        $region48: #{tpu_custom_call.1} parent=35 // pred_fallthru
          _
        %s239 = sand.u32 %s42, 1
        %s240 = scalar_lea.sflag [#allocation7], %s239
        %s241 = sand.u32 %s42, 1
        %s242 = smul.addr %s241, 16
        %s243 = scalar_lea.vmem [#allocation6], %s242
        %p244 = pneg %p55
        %p245 = pneg %p52
        %p246 = pneg %p76
        %p247 = pneg %p73
        %p248 = pneg %p97
        %p249 = pneg %p94
        %p250 = pneg %p118
        %p251 = pneg %p115
        %p252 = pneg %p146
        %p253 = pneg %p143
        %s254 = sand.u32 %s133, 1
        %s255 = scalar_lea.sflag [#allocation8], %s254
        %s256 = sand.u32 %s133, 1
        %s257 = smul.addr %s256, 16
        %s258 = scalar_lea.vmem [#allocation12], %s257
        %s259 = smul.u32 2, %s27
        %p261 = scmp.eq.s32.totalorder %s27, 0
        // Predicated region
        $region49: #{tpu_custom_call.1} parent=35 // pred_check
          %p262 = pneg %p261
        $region50: #{tpu_custom_call.1} parent=35 // pred_check_branch
          %264 = sbr.rel (%p262) target = $region52
        $region51: #{tpu_custom_call.1} parent=35 // pred_region
          %v265 = vld [vmem:[%s226] sm:$0xf]
          %v266 = vld [vmem:[%s226 + $0x4] sm:$0xf]
          %v267 = vld [vmem:[%s226 + $0x8] sm:$0xf]
          %v268 = vld [vmem:[%s226 + $0xc] sm:$0xf]
          %v269 = vld [vmem:[#allocation9] sm:$0xff]
          %v270 = vld [vmem:[#allocation9 + $0x8] sm:$0xf]
          %v271 = vld [vmem:[#allocation9 + $0xc] sm:$0xff]
          %v272 = vld [vmem:[#allocation9 + $0x14] sm:$0xf]
          %v273 = vld [vmem:[#allocation9 + $0x18] sm:$0xff]
          %v274 = vld [vmem:[#allocation9 + $0x20] sm:$0xf]
          %v275 = vld [vmem:[#allocation9 + $0x24] sm:$0xff]
          %v276 = vld [vmem:[#allocation9 + $0x2c] sm:$0xf]
          %v277 = vld [vmem:[#allocation9 + $0x30] sm:$0xff]
          %v278 = vld [vmem:[#allocation9 + $0x38] sm:$0xf]
          %v279 = vld [vmem:[#allocation9 + $0x3c] sm:$0xff]
          %v280 = vld [vmem:[#allocation9 + $0x44] sm:$0xf]
          %v281 = vld [vmem:[#allocation9 + $0x48] sm:$0xff]
          %v282 = vld [vmem:[#allocation9 + $0x50] sm:$0xf]
          %v283 = vld [vmem:[#allocation9 + $0x54] sm:$0xff]
          %v284 = vld [vmem:[#allocation9 + $0x5c] sm:$0xf]
          %v285 = vld [vmem:[#allocation9 + $0x60] sm:$0xff]
          %v286 = vld [vmem:[#allocation9 + $0x68] sm:$0xf]
          %v287 = vld [vmem:[#allocation9 + $0x6c] sm:$0xff]
          %v288 = vld [vmem:[#allocation9 + $0x74] sm:$0xf]
          %v289 = vld [vmem:[#allocation9 + $0x78] sm:$0xff]
          %v290 = vld [vmem:[#allocation9 + $0x80] sm:$0xf]
          %v291 = vld [vmem:[#allocation9 + $0x84] sm:$0xff]
          %v292 = vld [vmem:[#allocation9 + $0x8c] sm:$0xf]
          %v293 = vld [vmem:[#allocation9 + $0x90] sm:$0xff]
          %v294 = vld [vmem:[#allocation9 + $0x98] sm:$0xf]
          %v295 = vld [vmem:[#allocation9 + $0x9c] sm:$0xff]
          %v296 = vld [vmem:[#allocation9 + $0xa4] sm:$0xf]
          %v297 = vld [vmem:[#allocation9 + $0xa8] sm:$0xff]
          %v298 = vld [vmem:[#allocation9 + $0xb0] sm:$0xf]
          %v299 = vld [vmem:[#allocation9 + $0xb4] sm:$0xff]
          %v300 = vld [vmem:[#allocation9 + $0xbc] sm:$0xf]
          %v305 = vunpack.c.l.b16 %v265
          %v306 = vunpack.c.l.b16 %v266
          %v307 = vunpack.c.l.b16 %v267
          %v308 = vunpack.c.l.b16 %v268
          %v309 = vpack.c.b16 %v306, %v305
          %v310 = vpack.c.b16 %v308, %v307
          %v345 = vunpack.c.l.b16 %v269
          %v346 = vunpack.c.h.b16 %v269
          %v347 = vunpack.c.l.b16 %v270
          %v348 = vunpack.c.l.b16 %v271
          %v349 = vunpack.c.h.b16 %v271
          %v350 = vunpack.c.l.b16 %v272
          %v351 = vunpack.c.l.b16 %v273
          %v352 = vunpack.c.h.b16 %v273
          %v353 = vunpack.c.l.b16 %v274
          %v354 = vunpack.c.l.b16 %v275
          %v355 = vunpack.c.h.b16 %v275
          %v356 = vunpack.c.l.b16 %v276
          %v357 = vunpack.c.l.b16 %v277
          %v358 = vunpack.c.h.b16 %v277
          %v359 = vunpack.c.l.b16 %v278
          %v360 = vunpack.c.l.b16 %v279
          %v361 = vunpack.c.h.b16 %v279
          %v362 = vunpack.c.l.b16 %v280
          %v363 = vunpack.c.l.b16 %v281
          %v364 = vunpack.c.h.b16 %v281
          %v365 = vunpack.c.l.b16 %v282
          %v366 = vunpack.c.l.b16 %v283
          %v367 = vunpack.c.h.b16 %v283
          %v368 = vunpack.c.l.b16 %v284
          %v369 = vunpack.c.l.b16 %v285
          %v370 = vunpack.c.h.b16 %v285
          %v371 = vunpack.c.l.b16 %v286
          %v372 = vunpack.c.l.b16 %v287
          %v373 = vunpack.c.h.b16 %v287
          %v374 = vunpack.c.l.b16 %v288
          %v375 = vunpack.c.l.b16 %v289
          %v376 = vunpack.c.h.b16 %v289
          %v377 = vunpack.c.l.b16 %v290
          %v378 = vunpack.c.l.b16 %v291
          %v379 = vunpack.c.h.b16 %v291
          %v380 = vunpack.c.l.b16 %v292
          %v381 = vunpack.c.l.b16 %v293
          %v382 = vunpack.c.h.b16 %v293
          %v383 = vunpack.c.l.b16 %v294
          %v384 = vunpack.c.l.b16 %v295
          %v385 = vunpack.c.h.b16 %v295
          %v386 = vunpack.c.l.b16 %v296
          %v387 = vunpack.c.l.b16 %v297
          %v388 = vunpack.c.h.b16 %v297
          %v389 = vunpack.c.l.b16 %v298
          %v390 = vunpack.c.l.b16 %v299
          %v391 = vunpack.c.h.b16 %v299
          %v392 = vunpack.c.l.b16 %v300
          %v393 = vpack.c.b16 %v348, %v345
          %v394 = vpack.c.b16 %v349, %v346
          %v395 = vpack.c.b16 %v350, %v347
          %v396 = vpack.c.b16 %v354, %v351
          %v397 = vpack.c.b16 %v355, %v352
          %v398 = vpack.c.b16 %v356, %v353
          %v399 = vpack.c.b16 %v360, %v357
          %v400 = vpack.c.b16 %v361, %v358
          %v401 = vpack.c.b16 %v362, %v359
          %v402 = vpack.c.b16 %v366, %v363
          %v403 = vpack.c.b16 %v367, %v364
          %v404 = vpack.c.b16 %v368, %v365
          %v405 = vpack.c.b16 %v372, %v369
          %v406 = vpack.c.b16 %v373, %v370
          %v407 = vpack.c.b16 %v374, %v371
          %v408 = vpack.c.b16 %v378, %v375
          %v409 = vpack.c.b16 %v379, %v376
          %v410 = vpack.c.b16 %v380, %v377
          %v411 = vpack.c.b16 %v384, %v381
          %v412 = vpack.c.b16 %v385, %v382
          %v413 = vpack.c.b16 %v386, %v383
          %v414 = vpack.c.b16 %v390, %v387
          %v415 = vpack.c.b16 %v391, %v388
          %v416 = vpack.c.b16 %v392, %v389
          %441 = vmatprep.subr.bf16.mxu0 %v394
          %442 = vmatpush1.bf16.msra.mxu0 %v393
          %443 = vmatprep.subr.bf16.mxu0 %v397
          %444 = vmatpush1.bf16.msra.mxu0 %v396
          %445 = vmatprep.subr.bf16.mxu0 %v400
          %446 = vmatpush1.bf16.msra.mxu0 %v399
          %447 = vmatprep.subr.bf16.mxu0 %v403
          %448 = vmatpush1.bf16.msra.mxu0 %v402
          %449 = vmatprep.subr.bf16.mxu0 %v406
          %450 = vmatpush1.bf16.msra.mxu0 %v405
          %451 = vmatprep.subr.bf16.mxu0 %v409
          %452 = vmatpush1.bf16.msra.mxu0 %v408
          %453 = vmatprep.subr.bf16.mxu0 %v412
          %454 = vmatpush1.bf16.msra.mxu0 %v411
          %455 = vmatprep.subr.bf16.mxu0 %v415
          %456 = vmatpush1.bf16.msra.mxu0 %v414
          %457 = vmatprep.subr.bf16.mxu0 0
          %458 = vmatpush1.bf16.msra.mxu0 0
          %459 = vmatprep.subr.bf16.mxu0 0
          %460 = vmatpush1.bf16.msra.mxu0 0
          %461 = vmatprep.subr.bf16.mxu0 0
          %462 = vmatpush1.bf16.msra.mxu0 0
          %463 = vmatprep.subr.bf16.mxu0 0
          %464 = vmatpush1.bf16.msra.mxu0 0
          %465 = vmatprep.subr.bf16.mxu0 0
          %466 = vmatpush1.bf16.msra.mxu0 0
          %467 = vmatprep.subr.bf16.mxu0 0
          %468 = vmatpush1.bf16.msra.mxu0 0
          %469 = vmatprep.subr.bf16.mxu0 0
          %470 = vmatpush1.bf16.msra.mxu0 0
          %471 = vmatprep.subr.bf16.mxu0 0
          %472 = vmatpush1.bf16.msra.mxu0 0
          %473 = vmatprep.mubr.bf16.mxu0 0
          %474 = vmatmul.mubr.bf16.gmra.mrb[0].mxu0 %v309
          %v475 = vpop.f32.mrb[0].mxu0
          %v476 = vadd.f32 0.0, %v475
          %v477 = vpop.f32.mrb[0].mxu0
          %v478 = vadd.f32 0.0, %v477
          %v479 = vpop.f32.mrb[0].mxu0
          %v480 = vadd.f32 0.0, %v479
          %v481 = vpop.f32.mrb[0].mxu0
          %v482 = vadd.f32 0.0, %v481
          %483 = vmatprep.mubr.bf16.mxu0 0
          %484 = vmatmul.mubr.bf16.gmra.mrb[0].mxu0 %v310
          %v485 = vpop.f32.mrb[0].mxu0
          %v486 = vadd.f32 0.0, %v485
          %v487 = vpop.f32.mrb[0].mxu0
          %v488 = vadd.f32 0.0, %v487
          %v489 = vpop.f32.mrb[0].mxu0
          %v490 = vadd.f32 0.0, %v489
          %v491 = vpop.f32.mrb[0].mxu0
          %v492 = vadd.f32 0.0, %v491
          %493 = vdwg.mxu0
          %494 = vmatprep.subr.bf16.mxu0 0
          %495 = vmatpush1.bf16.msra.mxu0 %v395
          %496 = vmatprep.subr.bf16.mxu0 0
          %497 = vmatpush1.bf16.msra.mxu0 %v398
          %498 = vmatprep.subr.bf16.mxu0 0
          %499 = vmatpush1.bf16.msra.mxu0 %v401
          %500 = vmatprep.subr.bf16.mxu0 0
          %501 = vmatpush1.bf16.msra.mxu0 %v404
          %502 = vmatprep.subr.bf16.mxu0 0
          %503 = vmatpush1.bf16.msra.mxu0 %v407
          %504 = vmatprep.subr.bf16.mxu0 0
          %505 = vmatpush1.bf16.msra.mxu0 %v410
          %506 = vmatprep.subr.bf16.mxu0 0
          %507 = vmatpush1.bf16.msra.mxu0 %v413
          %508 = vmatprep.subr.bf16.mxu0 0
          %509 = vmatpush1.bf16.msra.mxu0 %v416
          %510 = vmatprep.subr.bf16.mxu0 0
          %511 = vmatpush1.bf16.msra.mxu0 0
          %512 = vmatprep.subr.bf16.mxu0 0
          %513 = vmatpush1.bf16.msra.mxu0 0
          %514 = vmatprep.subr.bf16.mxu0 0
          %515 = vmatpush1.bf16.msra.mxu0 0
          %516 = vmatprep.subr.bf16.mxu0 0
          %517 = vmatpush1.bf16.msra.mxu0 0
          %518 = vmatprep.subr.bf16.mxu0 0
          %519 = vmatpush1.bf16.msra.mxu0 0
          %520 = vmatprep.subr.bf16.mxu0 0
          %521 = vmatpush1.bf16.msra.mxu0 0
          %522 = vmatprep.subr.bf16.mxu0 0
          %523 = vmatpush1.bf16.msra.mxu0 0
          %524 = vmatprep.subr.bf16.mxu0 0
          %525 = vmatpush1.bf16.msra.mxu0 0
          %526 = vmatprep.mubr.bf16.mxu0 0
          %527 = vmatmul.mubr.bf16.gmra.mrb[0].mxu0 %v309
          %v528 = vpop.f32.mrb[0].mxu0
          %v529 = vadd.f32 0.0, %v528
          %v530 = vpop.f32.mrb[0].mxu0
          %v531 = vpop.f32.mrb[0].mxu0
          %v532 = vadd.f32 0.0, %v531
          %v533 = vpop.f32.mrb[0].mxu0
          %534 = vmatprep.mubr.bf16.mxu0 0
          %535 = vmatmul.mubr.bf16.gmra.mrb[0].mxu0 %v310
          %v536 = vpop.f32.mrb[0].mxu0
          %v537 = vadd.f32 0.0, %v536
          %v538 = vpop.f32.mrb[0].mxu0
          %v539 = vpop.f32.mrb[0].mxu0
          %v540 = vadd.f32 0.0, %v539
          %v541 = vpop.f32.mrb[0].mxu0
          %542 = vdwg.mxu0
          %v543 = vmul.f32 %v476, 0.125
          %v544 = vmul.f32 %v480, 0.125
          %v545 = vmul.f32 %v486, 0.125
          %v546 = vmul.f32 %v490, 0.125
          %v547 = vpack.c.bf16 %v544, %v543
          %v548 = vpack.c.bf16 %v546, %v545
          %vm549 = vcmask 523264
          %550 = vst.msk [vmem:[#allocation2] sm:$0xff] %vm549, %v547
          %551 = vst.msk [vmem:[#allocation2 + $0x8] sm:$0xff] %vm549, %v548
          %v552 = vpack.c.bf16 %v482, %v478
          %v553 = vpack.c.bf16 %v492, %v488
          %554 = vst.msk [vmem:[#allocation3] sm:$0xff] %vm549, %v552
          %555 = vst.msk [vmem:[#allocation3 + $0x8] sm:$0xff] %vm549, %v553
          %v556 = vpack.c.bf16 %v532, %v529
          %v557 = vpack.c.bf16 %v540, %v537
          %558 = vst.msk [vmem:[#allocation4] sm:$0xff] %vm549, %v556
          %559 = vst.msk [vmem:[#allocation4 + $0x8] sm:$0xff] %vm549, %v557
          %562 = vrot.lane.b32.xlu0 %v547, 64
          %v563 = vpop.permute.xlu0 %562
          %564 = vrot.lane.b32.xlu0 %v548, 64
          %v565 = vpop.permute.xlu0 %564
          %s568 = scalar_lea.vmem [#allocation2], 16
          %569 = vst.msk [vmem:[%s568] sm:$0xff] %vm549, %v563
          %570 = vst.msk [vmem:[%s568 + $0x8] sm:$0xff] %vm549, %v565
          %573 = vrot.lane.b32.xlu0 %v552, 64
          %v574 = vpop.permute.xlu0 %573
          %575 = vrot.lane.b32.xlu0 %v553, 64
          %v576 = vpop.permute.xlu0 %575
          %s579 = scalar_lea.vmem [#allocation3], 16
          %580 = vst.msk [vmem:[%s579] sm:$0xff] %vm549, %v574
          %581 = vst.msk [vmem:[%s579 + $0x8] sm:$0xff] %vm549, %v576
          %584 = vrot.lane.b32.xlu0 %v556, 64
          %v585 = vpop.permute.xlu0 %584
          %586 = vrot.lane.b32.xlu0 %v557, 64
          %v587 = vpop.permute.xlu0 %586
          %s590 = scalar_lea.vmem [#allocation4], 16
          %591 = vst.msk [vmem:[%s590] sm:$0xff] %vm549, %v585
          %592 = vst.msk [vmem:[%s590 + $0x8] sm:$0xff] %vm549, %v587
        $region52: #{tpu_custom_call.1} parent=35 // pred_fallthru
          _
        %s593 = smul.u32 %s27, 16
        %v594 = vlaneseq
        %v595 = vand.u32 %v594, 127
        %vm596 = vcmp.lt.s32.totalorder %v595, 30
        %v597 = vsel %vm596, 0.0, -1e+30
        %s598 = sshra.s32 %s593, 4
        %s599 = sand.u32 %s593, 15
        %s600 = smul.addr %s598, 8
        %s601 = scalar_lea.vmem [#allocation2], %s600
        %v602 = vld [vmem:[%s601] sm:$0xff]
        %v603 = vld [vmem:[#allocation3] sm:$0xff]
        %v604 = vld [vmem:[#allocation3 + $0x8] sm:$0xff]
        %v605 = vld [vmem:[#allocation4] sm:$0xff]
        %v606 = vld [vmem:[#allocation4 + $0x8] sm:$0xff]
        %vm607 = vcmask 523264
        %v609 = vsel %vm607, %v602, 0
        %v612 = vsel %vm607, %v603, 0
        %v615 = vsel %vm607, %v604, 0
        %617 = vmatprep.subr.bf16.mxu0 0
        %618 = vmatpush1.bf16.xpose.msra.mxu0 %v612
        %619 = vmatprep.subr.bf16.mxu0 0
        %620 = vmatpush1.bf16.xpose.msra.mxu0 %v615
        %621 = vmatprep.subr.bf16.mxu0 0
        %622 = vmatpush1.bf16.xpose.msra.mxu0 0
        %623 = vmatprep.subr.bf16.mxu0 0
        %624 = vmatpush1.bf16.xpose.msra.mxu0 0
        %625 = vmatprep.subr.bf16.mxu0 0
        %626 = vmatpush1.bf16.xpose.msra.mxu0 0
        %627 = vmatprep.subr.bf16.mxu0 0
        %628 = vmatpush1.bf16.xpose.msra.mxu0 0
        %629 = vmatprep.subr.bf16.mxu0 0
        %630 = vmatpush1.bf16.xpose.msra.mxu0 0
        %631 = vmatprep.subr.bf16.mxu0 0
        %632 = vmatpush1.bf16.xpose.msra.mxu0 0
        %633 = vmatprep.subr.bf16.mxu0 0
        %634 = vmatpush1.bf16.xpose.msra.mxu0 0
        %635 = vmatprep.subr.bf16.mxu0 0
        %636 = vmatpush1.bf16.xpose.msra.mxu0 0
        %637 = vmatprep.subr.bf16.mxu0 0
        %638 = vmatpush1.bf16.xpose.msra.mxu0 0
        %639 = vmatprep.subr.bf16.mxu0 0
        %640 = vmatpush1.bf16.xpose.msra.mxu0 0
        %641 = vmatprep.subr.bf16.mxu0 0
        %642 = vmatpush1.bf16.xpose.msra.mxu0 0
        %643 = vmatprep.subr.bf16.mxu0 0
        %644 = vmatpush1.bf16.xpose.msra.mxu0 0
        %645 = vmatprep.subr.bf16.mxu0 0
        %646 = vmatpush1.bf16.xpose.msra.mxu0 0
        %647 = vmatprep.subr.bf16.mxu0 0
        %648 = vmatpush1.bf16.xpose.msra.mxu0 0
        %649 = vmatprep.mubr.bf16.mxu0 0
        %650 = vmatmul.mubr.bf16.gmra.mrb[0].mxu0 %v609
        %v651 = vpop.f32.mrb[0].mxu0
        %v652 = vadd.f32 %v597, %v651
        %v653 = vpop.f32.mrb[0].mxu0
        %v654 = vpop.f32.mrb[0].mxu0
        %v655 = vadd.f32 %v597, %v654
        %v656 = vpop.f32.mrb[0].mxu0
        %657 = vdwg.mxu0
        %vm658 = vcmask 261120
        %v659 = vsel %vm658, %v652, -inf
        %660 = vmax.xlane.f32.xlu0 %v659
        %v661 = vpop.xlane.xlu0 %660
        %v662 = vsel %vm658, %v655, -inf
        %663 = vmax.xlane.f32.xlu0 %v662
        %v664 = vpop.xlane.xlu0 %663
        %v665 = vsub.f32 %v652, %v661
        %v666 = vsub.f32 %v655, %v664
        %v667 = vmul.f32 %v665, 1.442695
        %v668 = vpow.pop %v667
        %v669 = vmul.f32 %v666, 1.442695
        %v670 = vpow.pop %v669
        %v671 = vsel %vm658, %v668, 0.0
        %672 = vadd.xlane.f32.xlu0 %v671
        %v673 = vpop.xlane.xlu0 %672
        %v674 = vsel %vm658, %v670, 0.0
        %675 = vadd.xlane.f32.xlu0 %v674
        %v676 = vpop.xlane.xlu0 %675
        %v677 = vrcp.pop %v673
        %v678 = vrcp.pop %v676
        %v679 = vmul.f32 %v668, %v677
        %v680 = vmul.f32 %v670, %v678
        %v681 = vpack.c.bf16 %v680, %v679
        %v683 = vsel %vm658, %v681, 0
        %685 = vmatprep.subr.bf16.mxu0 0
        %686 = vmatpush1.bf16.msra.mxu0 %v605
        %687 = vmatprep.subr.bf16.mxu0 0
        %688 = vmatpush1.bf16.msra.mxu0 %v606
        %689 = vmatprep.subr.bf16.mxu0 0
        %690 = vmatpush1.bf16.msra.mxu0 0
        %691 = vmatprep.subr.bf16.mxu0 0
        %692 = vmatpush1.bf16.msra.mxu0 0
        %693 = vmatprep.subr.bf16.mxu0 0
        %694 = vmatpush1.bf16.msra.mxu0 0
        %695 = vmatprep.subr.bf16.mxu0 0
        %696 = vmatpush1.bf16.msra.mxu0 0
        %697 = vmatprep.subr.bf16.mxu0 0
        %698 = vmatpush1.bf16.msra.mxu0 0
        %699 = vmatprep.subr.bf16.mxu0 0
        %700 = vmatpush1.bf16.msra.mxu0 0
        %701 = vmatprep.subr.bf16.mxu0 0
        %702 = vmatpush1.bf16.msra.mxu0 0
        %703 = vmatprep.subr.bf16.mxu0 0
        %704 = vmatpush1.bf16.msra.mxu0 0
        %705 = vmatprep.subr.bf16.mxu0 0
        %706 = vmatpush1.bf16.msra.mxu0 0
        %707 = vmatprep.subr.bf16.mxu0 0
        %708 = vmatpush1.bf16.msra.mxu0 0
        %709 = vmatprep.subr.bf16.mxu0 0
        %710 = vmatpush1.bf16.msra.mxu0 0
        %711 = vmatprep.subr.bf16.mxu0 0
        %712 = vmatpush1.bf16.msra.mxu0 0
        %713 = vmatprep.subr.bf16.mxu0 0
        %714 = vmatpush1.bf16.msra.mxu0 0
        %715 = vmatprep.subr.bf16.mxu0 0
        %716 = vmatpush1.bf16.msra.mxu0 0
        %717 = vmatprep.mubr.bf16.mxu0 0
        %718 = vmatmul.mubr.bf16.gmra.mrb[0].mxu0 %v683
        %v719 = vpop.f32.mrb[0].mxu0
        %v720 = vadd.f32 0.0, %v719
        %v721 = vpop.f32.mrb[0].mxu0
        %v722 = vpop.f32.mrb[0].mxu0
        %v723 = vadd.f32 0.0, %v722
        %v724 = vpop.f32.mrb[0].mxu0
        %725 = vdwg.mxu0
        %v726 = vpack.c.bf16 %v723, %v720
        %727 = vst.msk [vmem:[#allocation5] sm:$0xff] %vm607, %v726
        %s728 = sadd.s32 %s598, 2
        %s729 = smul.addr %s728, 8
        %s730 = scalar_lea.vmem [#allocation2], %s729
        %v731 = vld [vmem:[%s730] sm:$0xff]
        %s732 = scalar_lea.vmem [#allocation3], 16
        %v733 = vld [vmem:[%s732] sm:$0xff]
        %v734 = vld [vmem:[%s732 + $0x8] sm:$0xff]
        %s735 = scalar_lea.vmem [#allocation4], 16
        %v736 = vld [vmem:[%s735] sm:$0xff]
        %v737 = vld [vmem:[%s735 + $0x8] sm:$0xff]
        %v739 = vsel %vm607, %v731, 0
        %v742 = vsel %vm607, %v733, 0
        %v745 = vsel %vm607, %v734, 0
        %747 = vmatprep.subr.bf16.mxu0 0
        %748 = vmatpush1.bf16.xpose.msra.mxu0 %v742
        %749 = vmatprep.subr.bf16.mxu0 0
        %750 = vmatpush1.bf16.xpose.msra.mxu0 %v745
        %751 = vmatprep.subr.bf16.mxu0 0
        %752 = vmatpush1.bf16.xpose.msra.mxu0 0
        %753 = vmatprep.subr.bf16.mxu0 0
        %754 = vmatpush1.bf16.xpose.msra.mxu0 0
        %755 = vmatprep.subr.bf16.mxu0 0
        %756 = vmatpush1.bf16.xpose.msra.mxu0 0
        %757 = vmatprep.subr.bf16.mxu0 0
        %758 = vmatpush1.bf16.xpose.msra.mxu0 0
        %759 = vmatprep.subr.bf16.mxu0 0
        %760 = vmatpush1.bf16.xpose.msra.mxu0 0
        %761 = vmatprep.subr.bf16.mxu0 0
        %762 = vmatpush1.bf16.xpose.msra.mxu0 0
        %763 = vmatprep.subr.bf16.mxu0 0
        %764 = vmatpush1.bf16.xpose.msra.mxu0 0
        %765 = vmatprep.subr.bf16.mxu0 0
        %766 = vmatpush1.bf16.xpose.msra.mxu0 0
        %767 = vmatprep.subr.bf16.mxu0 0
        %768 = vmatpush1.bf16.xpose.msra.mxu0 0
        %769 = vmatprep.subr.bf16.mxu0 0
        %770 = vmatpush1.bf16.xpose.msra.mxu0 0
        %771 = vmatprep.subr.bf16.mxu0 0
        %772 = vmatpush1.bf16.xpose.msra.mxu0 0
        %773 = vmatprep.subr.bf16.mxu0 0
        %774 = vmatpush1.bf16.xpose.msra.mxu0 0
        %775 = vmatprep.subr.bf16.mxu0 0
        %776 = vmatpush1.bf16.xpose.msra.mxu0 0
        %777 = vmatprep.subr.bf16.mxu0 0
        %778 = vmatpush1.bf16.xpose.msra.mxu0 0
        %779 = vmatprep.mubr.bf16.mxu0 0
        %780 = vmatmul.mubr.bf16.gmra.mrb[0].mxu0 %v739
        %v781 = vpop.f32.mrb[0].mxu0
        %v782 = vadd.f32 %v597, %v781
        %v783 = vpop.f32.mrb[0].mxu0
        %v784 = vpop.f32.mrb[0].mxu0
        %v785 = vadd.f32 %v597, %v784
        %v786 = vpop.f32.mrb[0].mxu0
        %787 = vdwg.mxu0
        %v788 = vsel %vm658, %v782, -inf
        %789 = vmax.xlane.f32.xlu0 %v788
        %v790 = vpop.xlane.xlu0 %789
        %v791 = vsel %vm658, %v785, -inf
        %792 = vmax.xlane.f32.xlu0 %v791
        %v793 = vpop.xlane.xlu0 %792
        %v794 = vsub.f32 %v782, %v790
        %v795 = vsub.f32 %v785, %v793
        %v796 = vmul.f32 %v794, 1.442695
        %v797 = vpow.pop %v796
        %v798 = vmul.f32 %v795, 1.442695
        %v799 = vpow.pop %v798
        %v800 = vsel %vm658, %v797, 0.0
        %801 = vadd.xlane.f32.xlu0 %v800
        %v802 = vpop.xlane.xlu0 %801
        %v803 = vsel %vm658, %v799, 0.0
        %804 = vadd.xlane.f32.xlu0 %v803
        %v805 = vpop.xlane.xlu0 %804
        %v806 = vrcp.pop %v802
        %v807 = vrcp.pop %v805
        %v808 = vmul.f32 %v797, %v806
        %v809 = vmul.f32 %v799, %v807
        %v810 = vpack.c.bf16 %v809, %v808
        %v812 = vsel %vm658, %v810, 0
        %814 = vmatprep.subr.bf16.mxu0 0
        %815 = vmatpush1.bf16.msra.mxu0 %v736
        %816 = vmatprep.subr.bf16.mxu0 0
        %817 = vmatpush1.bf16.msra.mxu0 %v737
        %818 = vmatprep.subr.bf16.mxu0 0
        %819 = vmatpush1.bf16.msra.mxu0 0
        %820 = vmatprep.subr.bf16.mxu0 0
        %821 = vmatpush1.bf16.msra.mxu0 0
        %822 = vmatprep.subr.bf16.mxu0 0
        %823 = vmatpush1.bf16.msra.mxu0 0
        %824 = vmatprep.subr.bf16.mxu0 0
        %825 = vmatpush1.bf16.msra.mxu0 0
        %826 = vmatprep.subr.bf16.mxu0 0
        %827 = vmatpush1.bf16.msra.mxu0 0
        %828 = vmatprep.subr.bf16.mxu0 0
        %829 = vmatpush1.bf16.msra.mxu0 0
        %830 = vmatprep.subr.bf16.mxu0 0
        %831 = vmatpush1.bf16.msra.mxu0 0
        %832 = vmatprep.subr.bf16.mxu0 0
        %833 = vmatpush1.bf16.msra.mxu0 0
        %834 = vmatprep.subr.bf16.mxu0 0
        %835 = vmatpush1.bf16.msra.mxu0 0
        %836 = vmatprep.subr.bf16.mxu0 0
        %837 = vmatpush1.bf16.msra.mxu0 0
        %838 = vmatprep.subr.bf16.mxu0 0
        %839 = vmatpush1.bf16.msra.mxu0 0
        %840 = vmatprep.subr.bf16.mxu0 0
        %841 = vmatpush1.bf16.msra.mxu0 0
        %842 = vmatprep.subr.bf16.mxu0 0
        %843 = vmatpush1.bf16.msra.mxu0 0
        %844 = vmatprep.subr.bf16.mxu0 0
        %845 = vmatpush1.bf16.msra.mxu0 0
        %846 = vmatprep.mubr.bf16.mxu0 0
        %847 = vmatmul.mubr.bf16.gmra.mrb[0].mxu0 %v812
        %v848 = vpop.f32.mrb[0].mxu0
        %v849 = vadd.f32 0.0, %v848
        %v850 = vpop.f32.mrb[0].mxu0
        %v851 = vpop.f32.mrb[0].mxu0
        %v852 = vadd.f32 0.0, %v851
        %v853 = vpop.f32.mrb[0].mxu0
        %854 = vdwg.mxu0
        %v855 = vpack.c.bf16 %v852, %v849
        %857 = vrot.lane.b32.xlu0 %v855, 64
        %v858 = vpop.permute.xlu0 %857
        %vm860 = vcmask 1048064
        %861 = vst.msk [vmem:[#allocation5] sm:$0xff] %vm860, %v858
        %v862 = vld [vmem:[#allocation5] sm:$0xff]
        %v863 = vld [vmem:[#allocation11] sm:$0xf]
        %v864 = vld [vmem:[#allocation11 + $0x4] sm:$0xf]
        %v865 = vld [vmem:[#allocation11 + $0x8] sm:$0xf]
        %v866 = vld [vmem:[#allocation11 + $0xc] sm:$0xf]
        %v867 = vld [vmem:[#allocation11 + $0x10] sm:$0xf]
        %v868 = vld [vmem:[#allocation11 + $0x14] sm:$0xf]
        %v869 = vld [vmem:[#allocation11 + $0x18] sm:$0xf]
        %v870 = vld [vmem:[#allocation11 + $0x1c] sm:$0xf]
        %v871 = vld [vmem:[#allocation11 + $0x20] sm:$0xf]
        %v872 = vld [vmem:[#allocation11 + $0x24] sm:$0xf]
        %v873 = vld [vmem:[#allocation11 + $0x28] sm:$0xf]
        %v874 = vld [vmem:[#allocation11 + $0x2c] sm:$0xf]
        %v875 = vld [vmem:[#allocation11 + $0x30] sm:$0xf]
        %v876 = vld [vmem:[#allocation11 + $0x34] sm:$0xf]
        %v877 = vld [vmem:[#allocation11 + $0x38] sm:$0xf]
        %v878 = vld [vmem:[#allocation11 + $0x3c] sm:$0xf]
        %v879 = vld [vmem:[%s3] sm:$0x1]
        %v881 = vlaneseq
        %v882 = vshrl.u32 %v881, 7
        %v883 = vsub.s32 0, %v882
        %v884 = vrot.slane %v879, %v883
        %v902 = vunpack.c.l.b16 %v863
        %v903 = vunpack.c.l.b16 %v864
        %v904 = vunpack.c.l.b16 %v865
        %v905 = vunpack.c.l.b16 %v866
        %v906 = vunpack.c.l.b16 %v867
        %v907 = vunpack.c.l.b16 %v868
        %v908 = vunpack.c.l.b16 %v869
        %v909 = vunpack.c.l.b16 %v870
        %v910 = vunpack.c.l.b16 %v871
        %v911 = vunpack.c.l.b16 %v872
        %v912 = vunpack.c.l.b16 %v873
        %v913 = vunpack.c.l.b16 %v874
        %v914 = vunpack.c.l.b16 %v875
        %v915 = vunpack.c.l.b16 %v876
        %v916 = vunpack.c.l.b16 %v877
        %v917 = vunpack.c.l.b16 %v878
        %v918 = vpack.c.b16 %v903, %v902
        %v919 = vpack.c.b16 %v905, %v904
        %v920 = vpack.c.b16 %v907, %v906
        %v921 = vpack.c.b16 %v909, %v908
        %v922 = vpack.c.b16 %v911, %v910
        %v923 = vpack.c.b16 %v913, %v912
        %v924 = vpack.c.b16 %v915, %v914
        %v925 = vpack.c.b16 %v917, %v916
        %934 = vmatprep.subr.bf16.mxu0 0
        %935 = vmatpush1.bf16.msra.mxu0 %v918
        %936 = vmatprep.subr.bf16.mxu0 0
        %937 = vmatpush1.bf16.msra.mxu0 %v919
        %938 = vmatprep.subr.bf16.mxu0 0
        %939 = vmatpush1.bf16.msra.mxu0 %v920
        %940 = vmatprep.subr.bf16.mxu0 0
        %941 = vmatpush1.bf16.msra.mxu0 %v921
        %942 = vmatprep.subr.bf16.mxu0 0
        %943 = vmatpush1.bf16.msra.mxu0 %v922
        %944 = vmatprep.subr.bf16.mxu0 0
        %945 = vmatpush1.bf16.msra.mxu0 %v923
        %946 = vmatprep.subr.bf16.mxu0 0
        %947 = vmatpush1.bf16.msra.mxu0 %v924
        %948 = vmatprep.subr.bf16.mxu0 0
        %949 = vmatpush1.bf16.msra.mxu0 %v925
        %950 = vmatprep.subr.bf16.mxu0 0
        %951 = vmatpush1.bf16.msra.mxu0 0
        %952 = vmatprep.subr.bf16.mxu0 0
        %953 = vmatpush1.bf16.msra.mxu0 0
        %954 = vmatprep.subr.bf16.mxu0 0
        %955 = vmatpush1.bf16.msra.mxu0 0
        %956 = vmatprep.subr.bf16.mxu0 0
        %957 = vmatpush1.bf16.msra.mxu0 0
        %958 = vmatprep.subr.bf16.mxu0 0
        %959 = vmatpush1.bf16.msra.mxu0 0
        %960 = vmatprep.subr.bf16.mxu0 0
        %961 = vmatpush1.bf16.msra.mxu0 0
        %962 = vmatprep.subr.bf16.mxu0 0
        %963 = vmatpush1.bf16.msra.mxu0 0
        %964 = vmatprep.subr.bf16.mxu0 0
        %965 = vmatpush1.bf16.msra.mxu0 0
        %966 = vmatprep.mubr.bf16.mxu0 0
        %967 = vmatmul.mubr.bf16.gmra.mrb[0].mxu0 %v862
        %v968 = vpop.f32.mrb[0].mxu0
        %v969 = vadd.f32 %v884, %v968
        %v970 = vpop.f32.mrb[0].mxu0
        %v971 = vpop.f32.mrb[0].mxu0
        %v972 = vadd.f32 %v884, %v971
        %v973 = vpop.f32.mrb[0].mxu0
        %974 = vdwg.mxu0
        %975 = vst [vmem:[%s258] sm:$0xff] %v969
        %976 = vst [vmem:[%s258 + $0x8] sm:$0xff] %v972
        %s977 = sand.u32 %s133, 1
        %s978 = scalar_lea.sflag [#allocation8], %s977
        %s979 = sand.u32 %s133, 1
        %s980 = smul.addr %s979, 16
        %s981 = scalar_lea.vmem [#allocation12], %s980
        // Predicated region
        $region53: #{tpu_custom_call.1} parent=35 // pred_check
          %p982 = pneg %p143
        $region54: #{tpu_custom_call.1} parent=35 // pred_check_branch
          %984 = sbr.rel (%p982) target = $region56
        $region55: #{tpu_custom_call.1} parent=35 // pred_region
          %s985 = smul.u32 2, %s27
          %s987 = ssub.s32 256, 256
          %988 = vsyncadd %s978, %s987
          %s989 = smul.addr %s26, 4
          %s990 = sadd.s32 %s985, %s989
          %s991 = smul.addr %s990, 128
          %s992 = scalar_lea.hbm %s4, %s991
          %s993 = sshll.u32 %s981, 4
          %s994 = int_to_ptr.vmem [resolvable:$true] %s993
          %999 = dma.vmem_to_hbm [thread:$0]  %s994, 256, %s992, %s978, 128, 128, 8
        $region56: #{tpu_custom_call.1} parent=35 // pred_fallthru
          _
      $region36: #{tpu_custom_call.1} parent=5 // pred_fallthru
        _
      %p1000 = scmp.le.s32.totalorder 2, %s17
      // Predicated region
      $region57: #{tpu_custom_call.1} parent=5 // pred_check
        %p1001 = pneg %p1000
      $region58: #{tpu_custom_call.1} parent=5 // pred_check_branch
        %1003 = sbr.rel (%p1001) target = $region60
      $region59: #{tpu_custom_call.1} parent=5 // pred_region
        %s1004 = ssub.s32 %s17, 2
        // Predicated region
        $region61: #{tpu_custom_call.1} parent=59 // pred_check
          %p1005 = pneg %p149
        $region62: #{tpu_custom_call.1} parent=59 // pred_check_branch
          %1007 = sbr.rel (%p1005) target = $region64
        $region63: #{tpu_custom_call.1} parent=59 // pred_region
          %s1008 = sand.u32 %s134, 1
          %s1009 = scalar_lea.sflag [#allocation8], %s1008
          %s1010 = sand.u32 %s134, 1
          %s1011 = smul.addr %s1010, 16
          %s1012 = scalar_lea.vmem [#allocation12], %s1011
          %1013 = dma.done %s1009, 256
        $region64: #{tpu_custom_call.1} parent=59 // pred_fallthru
          _
      $region60: #{tpu_custom_call.1} parent=5 // pred_fallthru
        _
    $region6: #{tpu_custom_call.1} parent=1 // loop_footer
      %s21 = sadd.s32 1, %s17
    $region7: #{tpu_custom_call.1} parent=1 // loop_footer_branch
      %16 = sbr.rel target = $region3
    $region8: #{tpu_custom_call.1} parent=1 // loop_exit
      _
    %1014 = vsyncpa [#allocation7], 1
    %s1015 = scalar_lea.sflag [#allocation7], 1
    %1016 = vsyncpa %s1015, 1
    %1017 = vsyncpa [#allocation10], 1
    %1018 = vsyncpa [#allocation8], 1
    %s1019 = scalar_lea.sflag [#allocation8], 1
    %1020 = vsyncpa %s1019, 1

</llo_original>
